<compile_context>
chip_gen: v7x
topology: tpu7x:2x2x1
jax: 0.10.0
libtpu: 0.0.40
codegen_flags: <defaults>
</compile_context>

<pallas_src>
import math
from functools import partial

import jax
import jax.numpy as jnp
from jax.experimental import pallas as pl
from jax.experimental.pallas import tpu as pltpu

BN_EPS = 1e-5
STATS_ROWS = 8                      # sublane-aligned per-tile stats block
_VMEM_LIMIT = 48 * 1024 * 1024      # safe on v5e/v6e (128 MiB) and v7x (64 MiB)
_VMEM_BUDGET = 24 * 1024 * 1024     # tile-sizing budget (leaves headroom)


def _round_up(x, m):
    return ((x + m - 1) // m) * m


def _pick_block_m(K, C_pad, requested):
    # bytes/row: double-buffered bf16 xcol in + bf16 y out + stats slack
    per_row = 2 * (K * 2 + C_pad * 2) + 64
    tm = min(int(requested), max(64, _VMEM_BUDGET // per_row))
    tm = max(16, (tm // 16) * 16)   # multiple of 16 (bf16 sublane packing)
    return tm


# ----------------------------------------------------------------------------
# Pass 1: conv (im2col matmul on the MXU) + per-tile BN partial sums
# ----------------------------------------------------------------------------
def conv_stats_kernel(xcol_ref, w_ref, y_ref, stats_ref):
    # xcol_ref: (tm, K) bf16   (ReLU already applied once per input element)
    # w_ref:    (K, C_pad) bf16, resident across grid steps
    # y_ref:    (tm, C_pad) bf16 raw conv output for this tile
    # stats_ref:(STATS_ROWS, C_pad) f32; row0 = sum(y), row1 = sum(y*y)
    y = jnp.dot(xcol_ref[...], w_ref[...], preferred_element_type=jnp.float32)
    y_ref[...] = y.astype(y_ref.dtype)
    s = jnp.sum(y, axis=0, keepdims=True)
    sq = jnp.sum(y * y, axis=0, keepdims=True)
    fill = jnp.zeros((STATS_ROWS - 2, s.shape[1]), jnp.float32)
    stats_ref[...] = jnp.concatenate([s, sq, fill], axis=0)


# ----------------------------------------------------------------------------
# Pass 2: apply BatchNorm affine  o = y * scale + shift
# ----------------------------------------------------------------------------
def bn_apply_kernel(y_ref, scale_ref, shift_ref, o_ref):
    y = y_ref[...].astype(jnp.float32)
    o_ref[...] = (y * scale_ref[...] + shift_ref[...]).astype(o_ref.dtype)


# ----------------------------------------------------------------------------
# Glue: im2col (host side, XLA-fused with ReLU/bf16 cast), layout conversion
# ----------------------------------------------------------------------------
def _im2col(x_nhwc, k, stride, padding, H_out, W_out):
    N, H, W, C = x_nhwc.shape
    xp = jnp.pad(x_nhwc, ((0, 0), (padding, padding), (padding, padding), (0, 0)))
    cols = []
    for i in range(k):
        for j in range(k):
            cols.append(xp[:, i:i + stride * H_out:stride,
                              j:j + stride * W_out:stride, :])
    # last-axis ordering: index = (i*k + j)*C + c_in  (matches weight reshape)
    xcol = jnp.concatenate(cols, axis=-1)
    return xcol.reshape(N * H_out * W_out, k * k * C)


@partial(jax.jit, static_argnames=("stride", "padding", "block_m"))
def relu_conv_bn(x_nchw, weight, gamma, beta, *, stride, padding, block_m=512):
    """x_nchw: (N, C_in, H, W); weight: (C_out, C_in, k, k); returns NCHW f32."""
    C_out, C_in, kh, kw = weight.shape
    assert kh == kw
    k = kh
    N, _, H, W = x_nchw.shape
    H_out = (H + 2 * padding - k) // stride + 1
    W_out = (W + 2 * padding - k) // stride + 1
    M = N * H_out * W_out
    K = k * k * C_in
    C_pad = _round_up(C_out, 128)          # lane-dense output channels

    # ReLU once per input element (pre-duplication), then bf16 for the MXU.
    x_nhwc = jnp.transpose(x_nchw, (0, 2, 3, 1)).astype(jnp.float32)
    x_relu = jnp.maximum(x_nhwc, 0.0).astype(jnp.bfloat16)

    if k == 1 and padding == 0:            # canonical DARTS 1x1 fast path
        xcol = x_relu[:, ::stride, ::stride, :].reshape(M, C_in)
    else:
        xcol = _im2col(x_relu, k, stride, padding, H_out, W_out)

    tm = _pick_block_m(K, C_pad, block_m)
    M_pad = _round_up(M, tm)
    if M_pad != M:                         # zero rows contribute 0 to the sums
        xcol = jnp.pad(xcol, ((0, M_pad - M), (0, 0)))
    num_tiles = M_pad // tm

    # weight: (C_out, C_in, k, k) -> (kh, kw, C_in, C_out) -> (K, C_pad) bf16
    w_mat = jnp.transpose(weight, (2, 3, 1, 0)).reshape(K, C_out)
    w_mat = jnp.pad(w_mat, ((0, 0), (0, C_pad - C_out))).astype(jnp.bfloat16)

    # ---- pass 1: streamed matmul + per-tile channel sums -------------------
    y_raw, stats = pl.pallas_call(
        conv_stats_kernel,
        out_shape=(
            jax.ShapeDtypeStruct((M_pad, C_pad), jnp.bfloat16),
            jax.ShapeDtypeStruct((num_tiles * STATS_ROWS, C_pad), jnp.float32),
        ),
        grid_spec=pltpu.PrefetchScalarGridSpec(
            num_scalar_prefetch=0,
            grid=(num_tiles,),
            in_specs=[
                pl.BlockSpec((tm, K), lambda i: (i, 0)),        # streamed
                pl.BlockSpec((K, C_pad), lambda i: (0, 0)),     # resident
            ],
            out_specs=[
                pl.BlockSpec((tm, C_pad), lambda i: (i, 0)),
                pl.BlockSpec((STATS_ROWS, C_pad), lambda i: (i, 0)),
            ],
        ),
        compiler_params=pltpu.CompilerParams(
            dimension_semantics=("parallel",),
            vmem_limit_bytes=_VMEM_LIMIT,
        ),
    )(xcol, w_mat)

    # ---- tiny global BN reduction (f32) ------------------------------------
    tot = jnp.sum(stats.reshape(num_tiles, STATS_ROWS, C_pad), axis=0)
    mean = tot[0] / M                                    # real M, not M_pad
    var = jnp.maximum(tot[1] / M - mean * mean, 0.0)     # guard cancellation
    inv_std = jax.lax.rsqrt(var + BN_EPS)
    gamma_p = jnp.pad(gamma.astype(jnp.float32), (0, C_pad - C_out))
    beta_p = jnp.pad(beta.astype(jnp.float32), (0, C_pad - C_out))
    scale = (gamma_p * inv_std).reshape(1, C_pad)
    shift = (beta_p - mean * gamma_p * inv_std).reshape(1, C_pad)

    # ---- pass 2: normalize, lane-dense output -------------------------------
    out_flat = pl.pallas_call(
        bn_apply_kernel,
        out_shape=jax.ShapeDtypeStruct((M_pad, C_pad), jnp.float32),
        grid_spec=pltpu.PrefetchScalarGridSpec(
            num_scalar_prefetch=0,
            grid=(num_tiles,),
            in_specs=[
                pl.BlockSpec((tm, C_pad), lambda i: (i, 0)),    # streamed
                pl.BlockSpec((1, C_pad), lambda i: (0, 0)),     # resident
                pl.BlockSpec((1, C_pad), lambda i: (0, 0)),     # resident
            ],
            out_specs=pl.BlockSpec((tm, C_pad), lambda i: (i, 0)),
        ),
        compiler_params=pltpu.CompilerParams(
            dimension_semantics=("parallel",),
            vmem_limit_bytes=_VMEM_LIMIT,
        ),
    )(y_raw, scale, shift)

    out = out_flat[:M, :C_out].reshape(N, H_out, W_out, C_out)
    return jnp.transpose(out, (0, 3, 1, 2))   # back to NCHW (PyTorch layout)


# ----------------------------------------------------------------------------
# Pure-JAX f32 reference (PyTorch training-mode BN, biased variance)
# ----------------------------------------------------------------------------
def reference(x_nchw, weight, gamma, beta, *, stride, padding):
    xr = jnp.maximum(x_nchw, 0.0)
    y = jax.lax.conv_general_dilated(
        xr, weight,
        window_strides=(stride, stride),
        padding=((padding, padding), (padding, padding)),
        dimension_numbers=("NCHW", "OIHW", "NCHW"),
    )
    mean = jnp.mean(y, axis=(0, 2, 3), keepdims=True)
    var = jnp.mean((y - mean) ** 2, axis=(0, 2, 3), keepdims=True)
    return (y - mean) / jnp.sqrt(var + BN_EPS) * gamma.reshape(1, -1, 1, 1) + \
        beta.reshape(1, -1, 1, 1)


# ----------------------------------------------------------------------------
# Deterministic parameter init (mirrors nn.Conv2d / nn.BatchNorm2d(affine=True))
# ----------------------------------------------------------------------------
def init_params(key, C_in, C_out, k):
    fan_in = C_in * k * k
    bound = 1.0 / math.sqrt(fan_in)
    weight = jax.random.uniform(
        key, (C_out, C_in, k, k), jnp.float32, minval=-bound, maxval=bound
    )
    gamma = jnp.ones((C_out,), jnp.float32)
    beta = jnp.zeros((C_out,), jnp.float32)
    return weight, gamma, beta


if __name__ == "__main__":
    key = jax.random.PRNGKey(0)
    kx, kw1, kw2 = jax.random.split(key, 3)

    N, C_in, H, W = 2, 4, 16, 16
    x = jax.random.normal(kx, (N, C_in, H, W), jnp.float32)

    # Tolerance note: the kernel feeds the MXU (and stores the conv
    # intermediate) in bfloat16, so compare against the f32 reference with a
    # bf16-appropriate tolerance.
    TOL = dict(atol=3e-2, rtol=3e-2)

    # Config 1: 1x1 conv, stride 1, padding 0 (canonical DARTS ReLUConvBN).
    # block_m=128 -> 4 M-tiles: exercises the multi-tile grid + stats reduce.
    C_out1 = 8
    w1, g1, b1 = init_params(kw1, C_in, C_out1, 1)
    out1 = relu_conv_bn(x, w1, g1, b1, stride=1, padding=0, block_m=128)
    jax.block_until_ready(out1)
    ref1 = reference(x, w1, g1, b1, stride=1, padding=0)
    assert out1.shape == (N, C_out1, H, W)
    assert jnp.allclose(out1, ref1, **TOL)

    # Config 2: 3x3 conv, stride 1, padding 1 (im2col path).
    # block_m=384 does not divide M=512 -> exercises the zero-padded M tail.
    C_out2 = 8
    w2, g2, b2 = init_params(kw2, C_in, C_out2, 3)
    out2 = relu_conv_bn(x, w2, g2, b2, stride=1, padding=1, block_m=384)
    jax.block_until_ready(out2)
    ref2 = reference(x, w2, g2, b2, stride=1, padding=1)
    assert out2.shape == (N, C_out2, H, W)
    assert jnp.allclose(out2, ref2, **TOL)

    print("KERNEL_OK")
</pallas_src>

<mosaic_0001>
module attributes {stable_mosaic.version = 11 : i64} {
  func.func @conv_stats_kernel(%arg0: i32, %arg1: memref<128x4xbf16, #tpu.memory_space<vmem>>, %arg2: memref<4x128xbf16, #tpu.memory_space<vmem>>, %arg3: memref<128x128xbf16, #tpu.memory_space<vmem>>, %arg4: memref<8x128xf32, #tpu.memory_space<vmem>>) attributes {dimension_semantics = [#tpu.dimension_semantics<parallel>], iteration_bounds = array<i64: 4>, scalar_prefetch = 0 : i64, scratch_operands = 0 : i64, tpu.core_type = #tpu.core_type<tc>, window_params = [{transform_indices = @transform_0, window_bounds = array<i64: 128, 4>}, {pipeline_mode = #tpu.pipeline_mode<synchronous>, transform_indices = @transform_1, window_bounds = array<i64: 4, 128>}, {transform_indices = @transform_2, window_bounds = array<i64: 128, 128>}, {transform_indices = @transform_3, window_bounds = array<i64: 8, 128>}]} {
    %c0 = arith.constant 0 : index
    %c0_0 = arith.constant 0 : index
    %0 = vector.load %arg1[%c0, %c0_0] : memref<128x4xbf16, #tpu.memory_space<vmem>>, vector<128x4xbf16>
    %c0_1 = arith.constant 0 : index
    %c0_2 = arith.constant 0 : index
    %1 = vector.load %arg2[%c0_1, %c0_2] : memref<4x128xbf16, #tpu.memory_space<vmem>>, vector<4x128xbf16>
    %cst = arith.constant dense<0.000000e+00> : vector<128x128xf32>
    %2 = tpu.matmul %0, %1, %cst {dimension_numbers = #tpu.dot_dimension_numbers<[1], [0], [0], [1], [0, 0, 1, 1], [], []>} : vector<128x4xbf16>, vector<4x128xbf16>, vector<128x128xf32> -> vector<128x128xf32>
    %3 = arith.truncf %2 : vector<128x128xf32> to vector<128x128xbf16>
    %c0_3 = arith.constant 0 : index
    %c0_4 = arith.constant 0 : index
    %4 = vector.load %arg3[%c0_3, %c0_4] : memref<128x128xbf16, #tpu.memory_space<vmem>>, vector<128x128xbf16>
    tpu.vector_store %arg3[%c0_3, %c0_4], %3 {strides = array<i32>} : memref<128x128xbf16, #tpu.memory_space<vmem>>, vector<128x128xbf16>,
    %cst_5 = arith.constant dense<0.000000e+00> : vector<128xf32>
    %5 = vector.multi_reduction <add>, %2, %cst_5 [0] : vector<128x128xf32> to vector<128xf32>
    %6 = vector.shape_cast %5 : vector<128xf32> to vector<1x128xf32>
    %7 = arith.mulf %2, %2 : vector<128x128xf32>
    %cst_6 = arith.constant dense<0.000000e+00> : vector<128xf32>
    %8 = vector.multi_reduction <add>, %7, %cst_6 [0] : vector<128x128xf32> to vector<128xf32>
    %9 = vector.shape_cast %8 : vector<128xf32> to vector<1x128xf32>
    %cst_7 = arith.constant 0.000000e+00 : f32
    %10 = vector.broadcast %cst_7 : f32 to vector<6x128xf32>
    %11 = tpu.concatenate %6, %9, %10 in 0 : vector<1x128xf32>, vector<1x128xf32>, vector<6x128xf32> -> vector<8x128xf32>
    %c0_8 = arith.constant 0 : index
    %c0_9 = arith.constant 0 : index
    %12 = vector.load %arg4[%c0_8, %c0_9] : memref<8x128xf32, #tpu.memory_space<vmem>>, vector<8x128xf32>
    tpu.vector_store %arg4[%c0_8, %c0_9], %11 {strides = array<i32>} : memref<8x128xf32, #tpu.memory_space<vmem>>, vector<8x128xf32>,
    return
  }
  func.func @transform_0(%arg0: i32) -> (i32, i32) {
    %c0_i32 = arith.constant 0 : i32
    %c0_i32_0 = arith.constant 0 : i32
    return %arg0, %c0_i32 : i32, i32
  }
  func.func @transform_1(%arg0: i32) -> (i32, i32) {
    %c0_i32 = arith.constant 0 : i32
    %c0_i32_0 = arith.constant 0 : i32
    %c0_i32_1 = arith.constant 0 : i32
    return %c0_i32, %c0_i32_0 : i32, i32
  }
  func.func @transform_2(%arg0: i32) -> (i32, i32) {
    %c0_i32 = arith.constant 0 : i32
    %c0_i32_0 = arith.constant 0 : i32
    return %arg0, %c0_i32 : i32, i32
  }
  func.func @transform_3(%arg0: i32) -> (i32, i32) {
    %c0_i32 = arith.constant 0 : i32
    %c0_i32_0 = arith.constant 0 : i32
    return %arg0, %c0_i32 : i32, i32
  }
}

module attributes {stable_mosaic.version = 11 : i64} {
  func.func @bn_apply_kernel(%arg0: i32, %arg1: memref<128x128xbf16, #tpu.memory_space<vmem>>, %arg2: memref<1x128xf32, #tpu.memory_space<vmem>>, %arg3: memref<1x128xf32, #tpu.memory_space<vmem>>, %arg4: memref<128x128xf32, #tpu.memory_space<vmem>>) attributes {dimension_semantics = [#tpu.dimension_semantics<parallel>], iteration_bounds = array<i64: 4>, scalar_prefetch = 0 : i64, scratch_operands = 0 : i64, tpu.core_type = #tpu.core_type<tc>, window_params = [{transform_indices = @transform_0, window_bounds = array<i64: 128, 128>}, {pipeline_mode = #tpu.pipeline_mode<synchronous>, transform_indices = @transform_1, window_bounds = array<i64: 1, 128>}, {pipeline_mode = #tpu.pipeline_mode<synchronous>, transform_indices = @transform_2, window_bounds = array<i64: 1, 128>}, {transform_indices = @transform_3, window_bounds = array<i64: 128, 128>}]} {
    %c0 = arith.constant 0 : index
    %c0_0 = arith.constant 0 : index
    %0 = vector.load %arg1[%c0, %c0_0] : memref<128x128xbf16, #tpu.memory_space<vmem>>, vector<128x128xbf16>
    %1 = arith.extf %0 : vector<128x128xbf16> to vector<128x128xf32>
    %c0_1 = arith.constant 0 : index
    %c0_2 = arith.constant 0 : index
    %2 = vector.load %arg2[%c0_1, %c0_2] : memref<1x128xf32, #tpu.memory_space<vmem>>, vector<1x128xf32>
    %3 = vector.broadcast %2 : vector<1x128xf32> to vector<128x128xf32>
    %4 = arith.mulf %1, %3 : vector<128x128xf32>
    %c0_3 = arith.constant 0 : index
    %c0_4 = arith.constant 0 : index
    %5 = vector.load %arg3[%c0_3, %c0_4] : memref<1x128xf32, #tpu.memory_space<vmem>>, vector<1x128xf32>
    %6 = vector.broadcast %5 : vector<1x128xf32> to vector<128x128xf32>
    %7 = arith.addf %4, %6 : vector<128x128xf32>
    %c0_5 = arith.constant 0 : index
    %c0_6 = arith.constant 0 : index
    %8 = vector.load %arg4[%c0_5, %c0_6] : memref<128x128xf32, #tpu.memory_space<vmem>>, vector<128x128xf32>
    tpu.vector_store %arg4[%c0_5, %c0_6], %7 {strides = array<i32>} : memref<128x128xf32, #tpu.memory_space<vmem>>, vector<128x128xf32>,
    return
  }
  func.func @transform_0(%arg0: i32) -> (i32, i32) {
    %c0_i32 = arith.constant 0 : i32
    %c0_i32_0 = arith.constant 0 : i32
    return %arg0, %c0_i32 : i32, i32
  }
  func.func @transform_1(%arg0: i32) -> (i32, i32) {
    %c0_i32 = arith.constant 0 : i32
    %c0_i32_0 = arith.constant 0 : i32
    %c0_i32_1 = arith.constant 0 : i32
    return %c0_i32, %c0_i32_0 : i32, i32
  }
  func.func @transform_2(%arg0: i32) -> (i32, i32) {
    %c0_i32 = arith.constant 0 : i32
    %c0_i32_0 = arith.constant 0 : i32
    %c0_i32_1 = arith.constant 0 : i32
    return %c0_i32, %c0_i32_0 : i32, i32
  }
  func.func @transform_3(%arg0: i32) -> (i32, i32) {
    %c0_i32 = arith.constant 0 : i32
    %c0_i32_0 = arith.constant 0 : i32
    return %arg0, %c0_i32 : i32, i32
  }
}

</mosaic_0001>

<llo_original>
// kernel: relu_conv_bn.3
$region0: #{relu_conv_bn.3}
  #allocation0 [shape = 'u32[]', space=smem, size = 0x4, offset = 0x4, fixed_abs, tag = 'smem constant byte address 0x4 - core index']
  #allocation1 [shape = 'u32[144,128]{1,0:T(1,128)}', space=vmem, size = 0x12000, scoped, tag = 'internal scratch']
  %s0 = inlined_call_operand.vmem [shape: bf16[512,128], index: 0, kind: input, shape index: {}]
  %s1 = inlined_call_operand.vmem [shape: f32[1,128], index: 1, kind: input, shape index: {}]
  %s2 = inlined_call_operand.vmem [shape: f32[1,128], index: 2, kind: input, shape index: {}]
  %s3 = inlined_call_operand.vmem [shape: f32[512,128], index: 3, kind: output, shape index: {}]
  %s4 = sld [smem:[#allocation0]]
  $region45: #{relu_conv_bn.3} parent=0
    _
  %s6 = ssub.s32 1, %s4
  %s7 = scalar_select 0, %s6, %s4
  loop: start=0, step=1, limit=6
  $region2: #{relu_conv_bn.3} parent=0 // loop_pre_header
    _
  $region3: #{relu_conv_bn.3} parent=0 // loop_header
    %s9 = sphi 0, %s13
    %p10 = scmp.ge.s32.totalorder %s9, 6
    %s19 = sphi 0, %s21
    %s22 = sphi 0, %s19
    %s23 = sphi 0, %s22
    %s39 = sphi 0, %s23
    %s43 = sphi 0, %s43
    %s45 = sphi 0, %s43
    %s46 = sphi 0, %s45
    %s60 = sphi 0, %s46
    %s64 = sphi 0, %s64
    %s66 = sphi 0, %s64
    %s67 = sphi 0, %s66
    %s81 = sphi 0, %s67
    %s87 = sphi 0, %s89
    %s90 = sphi 0, %s87
    %s91 = sphi 0, %s90
    %s107 = sphi 0, %s91
  $region4: #{relu_conv_bn.3} parent=0 // loop_header_branch
    %12 = sbr.rel (%p10) target = $region8
  $region5: #{relu_conv_bn.3} parent=0 // loop_body
    %s14 = ssub.s32 %s9, 1
    %s15 = ssub.s32 %s9, 2
    %s16 = sadd.s32 %s9, 1
    %s17 = ssub.s32 %s9, %s16
    %p18 = scmp.eq.s32.totalorder %s17, 0
    %s20 = sadd.s32 %s19, 1
    %s21 = scalar_select %p18, %s19, %s20
    %p24 = pneg %p18
    %p25 = scmp.eq.s32.totalorder %s9, 3
    %p26 = por %p24, %p25
    %p27 = scmp.ne.s32.totalorder %s19, %s22
    %p28 = scmp.eq.s32.totalorder %s9, 0
    %p29 = por %p27, %p28
    %p30 = scmp.ne.s32.totalorder %s19, %s22
    %p31 = scmp.eq.s32.totalorder %s14, 3
    %p32 = por %p30, %p31
    %p33 = scmp.ne.s32.totalorder %s22, %s23
    %p34 = scmp.eq.s32.totalorder %s14, 0
    %p35 = por %p33, %p34
    %p36 = scmp.ne.s32.totalorder %s22, %s23
    %p37 = scmp.eq.s32.totalorder %s15, 3
    %p38 = por %p36, %p37
    %p40 = scmp.ne.s32.totalorder %s23, %s39
    %p41 = scmp.eq.s32.totalorder %s15, 0
    %p42 = por %p40, %p41
    %s44 = sadd.s32 %s43, 1
    %p47 = scmp.eq.s32.totalorder %s9, 3
    %p48 = scmp.ne.s32.totalorder %s43, %s45
    %p49 = scmp.eq.s32.totalorder %s9, 0
    %p50 = por %p48, %p49
    %p51 = scmp.ne.s32.totalorder %s43, %s45
    %p52 = scmp.eq.s32.totalorder %s14, 3
    %p53 = por %p51, %p52
    %p54 = scmp.ne.s32.totalorder %s45, %s46
    %p55 = scmp.eq.s32.totalorder %s14, 0
    %p56 = por %p54, %p55
    %p57 = scmp.ne.s32.totalorder %s45, %s46
    %p58 = scmp.eq.s32.totalorder %s15, 3
    %p59 = por %p57, %p58
    %p61 = scmp.ne.s32.totalorder %s46, %s60
    %p62 = scmp.eq.s32.totalorder %s15, 0
    %p63 = por %p61, %p62
    %s65 = sadd.s32 %s64, 1
    %p68 = scmp.eq.s32.totalorder %s9, 3
    %p69 = scmp.ne.s32.totalorder %s64, %s66
    %p70 = scmp.eq.s32.totalorder %s9, 0
    %p71 = por %p69, %p70
    %p72 = scmp.ne.s32.totalorder %s64, %s66
    %p73 = scmp.eq.s32.totalorder %s14, 3
    %p74 = por %p72, %p73
    %p75 = scmp.ne.s32.totalorder %s66, %s67
    %p76 = scmp.eq.s32.totalorder %s14, 0
    %p77 = por %p75, %p76
    %p78 = scmp.ne.s32.totalorder %s66, %s67
    %p79 = scmp.eq.s32.totalorder %s15, 3
    %p80 = por %p78, %p79
    %p82 = scmp.ne.s32.totalorder %s67, %s81
    %p83 = scmp.eq.s32.totalorder %s15, 0
    %p84 = por %p82, %p83
    %s85 = ssub.s32 %s9, %s16
    %p86 = scmp.eq.s32.totalorder %s85, 0
    %s88 = sadd.s32 %s87, 1
    %s89 = scalar_select %p86, %s87, %s88
    %p92 = pneg %p86
    %p93 = scmp.eq.s32.totalorder %s9, 3
    %p94 = por %p92, %p93
    %p95 = scmp.ne.s32.totalorder %s87, %s90
    %p96 = scmp.eq.s32.totalorder %s9, 0
    %p97 = por %p95, %p96
    %p98 = scmp.ne.s32.totalorder %s87, %s90
    %p99 = scmp.eq.s32.totalorder %s14, 3
    %p100 = por %p98, %p99
    %p101 = scmp.ne.s32.totalorder %s90, %s91
    %p102 = scmp.eq.s32.totalorder %s14, 0
    %p103 = por %p101, %p102
    %p104 = scmp.ne.s32.totalorder %s90, %s91
    %p105 = scmp.eq.s32.totalorder %s15, 3
    %p106 = por %p104, %p105
    %p108 = scmp.ne.s32.totalorder %s91, %s107
    %p109 = scmp.eq.s32.totalorder %s15, 0
    %p110 = por %p108, %p109
    %p111 = scmp.le.s32.totalorder 1, %s9
    %p112 = scmp.lt.s32.totalorder %s9, 5
    %p113 = pnand %p111, %p112
    %p114 = pneg %p113
    // Predicated region
    $region9: #{relu_conv_bn.3} parent=5 // pred_check
      _
    $region10: #{relu_conv_bn.3} parent=5 // pred_check_branch
      %116 = sbr.rel (%p113) target = $region12
    $region11: #{relu_conv_bn.3} parent=5 // pred_region
      %s117 = ssub.s32 %s9, 1
      // Predicated region
      $region13: #{relu_conv_bn.3} parent=11 // pred_check
        %p118 = pneg %p56
      $region14: #{relu_conv_bn.3} parent=11 // pred_check_branch
        %120 = sbr.rel (%p118) target = $region16
      $region15: #{relu_conv_bn.3} parent=11 // pred_region
        _
      $region16: #{relu_conv_bn.3} parent=11 // pred_fallthru
        _
      // Predicated region
      $region17: #{relu_conv_bn.3} parent=11 // pred_check
        %p121 = pneg %p77
      $region18: #{relu_conv_bn.3} parent=11 // pred_check_branch
        %123 = sbr.rel (%p121) target = $region20
      $region19: #{relu_conv_bn.3} parent=11 // pred_region
        _
      $region20: #{relu_conv_bn.3} parent=11 // pred_fallthru
        _
    $region12: #{relu_conv_bn.3} parent=5 // pred_fallthru
      _
    %p124 = scmp.lt.s32.totalorder %s9, 4
    // Predicated region
    $region21: #{relu_conv_bn.3} parent=5 // pred_check
      %p125 = pneg %p124
    $region22: #{relu_conv_bn.3} parent=5 // pred_check_branch
      %127 = sbr.rel (%p125) target = $region24
    $region23: #{relu_conv_bn.3} parent=5 // pred_region
      // Predicated region
      $region25: #{relu_conv_bn.3} parent=23 // pred_check
        %p128 = pneg %p29
      $region26: #{relu_conv_bn.3} parent=23 // pred_check_branch
        %130 = sbr.rel (%p128) target = $region28
      $region27: #{relu_conv_bn.3} parent=23 // pred_region
        %s131 = smul.u32 16, %s9
        %p132 = scmp.lt.s32.totalorder %s131, 63
        %s133 = scalar_select %p132, %s131, 63
        %s134 = smul.addr %s133, 4
        %s135 = scalar_lea.vmem %s0, %s134
        %s136 = smul.u32 16, %s9
      $region28: #{relu_conv_bn.3} parent=23 // pred_fallthru
        _
    $region24: #{relu_conv_bn.3} parent=5 // pred_fallthru
      _
    %p137 = scmp.le.s32.totalorder 1, %s9
    %p138 = scmp.lt.s32.totalorder %s9, 5
    %p139 = pnand %p137, %p138
    %p140 = pneg %p139
    // Predicated region
    $region29: #{relu_conv_bn.3} parent=5 // pred_check
      _
    $region30: #{relu_conv_bn.3} parent=5 // pred_check_branch
      %142 = sbr.rel (%p139) target = $region32
    $region31: #{relu_conv_bn.3} parent=5 // pred_region
      %s143 = ssub.s32 %s9, 1
      %s144 = smul.u32 16, %s14
      %p145 = scmp.lt.s32.totalorder %s144, 63
      %s146 = scalar_select %p145, %s144, 63
      %s147 = smul.addr %s146, 4
      %s148 = scalar_lea.vmem %s0, %s147
      %p149 = pneg %p35
      %p150 = pneg %p32
      %p151 = pneg %p56
      %p152 = pneg %p53
      %p153 = pneg %p77
      %p154 = pneg %p74
      %p155 = pneg %p103
      %p156 = pneg %p100
      %s157 = smul.u32 16, %s14
      %p158 = scmp.lt.s32.totalorder %s157, 63
      %s159 = scalar_select %p158, %s157, 63
      %s160 = smul.addr %s159, 8
      %s161 = scalar_lea.vmem %s3, %s160
      %s162 = smul.u32 16, %s14
      %p163 = scmp.lt.s32.totalorder %s162, 63
      %s164 = scalar_select %p163, %s162, 63
      %s165 = smul.addr %s164, 4
      %s166 = scalar_lea.vmem %s0, %s165
      %s167 = smul.u32 16, %s14
      %s168 = smul.u32 16, %s14
      %p169 = scmp.lt.s32.totalorder %s168, 63
      %s170 = scalar_select %p169, %s168, 63
      %s171 = smul.addr %s170, 8
      %s172 = scalar_lea.vmem %s3, %s171
      %s173 = smul.u32 16, %s14
      %v174 = vld [vmem:[%s166] sm:$0xf]
      %v175 = vld [vmem:[%s166 + $0x4] sm:$0xf]
      %v176 = vld [vmem:[%s166 + $0x8] sm:$0xf]
      %v177 = vld [vmem:[%s166 + $0xc] sm:$0xf]
      %v178 = vld [vmem:[%s166 + $0x10] sm:$0xf]
      %v179 = vld [vmem:[%s166 + $0x14] sm:$0xf]
      %v180 = vld [vmem:[%s166 + $0x18] sm:$0xf]
      %v181 = vld [vmem:[%s166 + $0x1c] sm:$0xf]
      %v182 = vld [vmem:[%s166 + $0x20] sm:$0xf]
      %v183 = vld [vmem:[%s166 + $0x24] sm:$0xf]
      %v184 = vld [vmem:[%s166 + $0x28] sm:$0xf]
      %v185 = vld [vmem:[%s166 + $0x2c] sm:$0xf]
      %v186 = vld [vmem:[%s166 + $0x30] sm:$0xf]
      %v187 = vld [vmem:[%s166 + $0x34] sm:$0xf]
      %v188 = vld [vmem:[%s166 + $0x38] sm:$0xf]
      %v189 = vld [vmem:[%s166 + $0x3c] sm:$0xf]
      %v190 = vunpack.c.l.bf16 %v174
      %v191 = vunpack.c.l.bf16 %v175
      %v192 = vunpack.c.l.bf16 %v176
      %v193 = vunpack.c.l.bf16 %v177
      %v194 = vunpack.c.l.bf16 %v178
      %v195 = vunpack.c.l.bf16 %v179
      %v196 = vunpack.c.l.bf16 %v180
      %v197 = vunpack.c.l.bf16 %v181
      %v198 = vunpack.c.l.bf16 %v182
      %v199 = vunpack.c.l.bf16 %v183
      %v200 = vunpack.c.l.bf16 %v184
      %v201 = vunpack.c.l.bf16 %v185
      %v202 = vunpack.c.l.bf16 %v186
      %v203 = vunpack.c.l.bf16 %v187
      %v204 = vunpack.c.l.bf16 %v188
      %v205 = vunpack.c.l.bf16 %v189
      %v206 = vld [vmem:[%s1] sm:$0x1]
      %v208 = vlaneseq
      %v209 = vshrl.u32 %v208, 7
      %v210 = vsub.s32 0, %v209
      %v211 = vrot.slane %v206, %v210
      %v213 = vmul.f32 %v190, %v211
      %v214 = vmul.f32 %v191, %v211
      %v215 = vmul.f32 %v192, %v211
      %v216 = vmul.f32 %v193, %v211
      %v217 = vmul.f32 %v194, %v211
      %v218 = vmul.f32 %v195, %v211
      %v219 = vmul.f32 %v196, %v211
      %v220 = vmul.f32 %v197, %v211
      %v221 = vmul.f32 %v198, %v211
      %v222 = vmul.f32 %v199, %v211
      %v223 = vmul.f32 %v200, %v211
      %v224 = vmul.f32 %v201, %v211
      %v225 = vmul.f32 %v202, %v211
      %v226 = vmul.f32 %v203, %v211
      %v227 = vmul.f32 %v204, %v211
      %v228 = vmul.f32 %v205, %v211
      %v229 = vld [vmem:[%s2] sm:$0x1]
      %v231 = vlaneseq
      %v232 = vshrl.u32 %v231, 7
      %v233 = vsub.s32 0, %v232
      %v234 = vrot.slane %v229, %v233
      %v236 = vadd.f32 %v213, %v234
      %v237 = vadd.f32 %v214, %v234
      %v238 = vadd.f32 %v215, %v234
      %v239 = vadd.f32 %v216, %v234
      %v240 = vadd.f32 %v217, %v234
      %v241 = vadd.f32 %v218, %v234
      %v242 = vadd.f32 %v219, %v234
      %v243 = vadd.f32 %v220, %v234
      %v244 = vadd.f32 %v221, %v234
      %v245 = vadd.f32 %v222, %v234
      %v246 = vadd.f32 %v223, %v234
      %v247 = vadd.f32 %v224, %v234
      %v248 = vadd.f32 %v225, %v234
      %v249 = vadd.f32 %v226, %v234
      %v250 = vadd.f32 %v227, %v234
      %v251 = vadd.f32 %v228, %v234
      %252 = vst [vmem:[%s172] sm:$0xff] %v236
      %253 = vst [vmem:[%s172 + $0x8] sm:$0xff] %v237
      %254 = vst [vmem:[%s172 + $0x10] sm:$0xff] %v238
      %255 = vst [vmem:[%s172 + $0x18] sm:$0xff] %v239
      %256 = vst [vmem:[%s172 + $0x20] sm:$0xff] %v240
      %257 = vst [vmem:[%s172 + $0x28] sm:$0xff] %v241
      %258 = vst [vmem:[%s172 + $0x30] sm:$0xff] %v242
      %259 = vst [vmem:[%s172 + $0x38] sm:$0xff] %v243
      %260 = vst [vmem:[%s172 + $0x40] sm:$0xff] %v244
      %261 = vst [vmem:[%s172 + $0x48] sm:$0xff] %v245
      %262 = vst [vmem:[%s172 + $0x50] sm:$0xff] %v246
      %263 = vst [vmem:[%s172 + $0x58] sm:$0xff] %v247
      %264 = vst [vmem:[%s172 + $0x60] sm:$0xff] %v248
      %265 = vst [vmem:[%s172 + $0x68] sm:$0xff] %v249
      %266 = vst [vmem:[%s172 + $0x70] sm:$0xff] %v250
      %267 = vst [vmem:[%s172 + $0x78] sm:$0xff] %v251
      %s268 = smul.u32 16, %s14
      %p269 = scmp.lt.s32.totalorder %s268, 63
      %s270 = scalar_select %p269, %s268, 63
      %s271 = smul.addr %s270, 8
      %s272 = scalar_lea.vmem %s3, %s271
      // Predicated region
      $region33: #{relu_conv_bn.3} parent=31 // pred_check
        %p273 = pneg %p100
      $region34: #{relu_conv_bn.3} parent=31 // pred_check_branch
        %275 = sbr.rel (%p273) target = $region36
      $region35: #{relu_conv_bn.3} parent=31 // pred_region
        %s276 = smul.u32 16, %s14
      $region36: #{relu_conv_bn.3} parent=31 // pred_fallthru
        _
    $region32: #{relu_conv_bn.3} parent=5 // pred_fallthru
      _
    %p277 = scmp.le.s32.totalorder 2, %s9
    // Predicated region
    $region37: #{relu_conv_bn.3} parent=5 // pred_check
      %p278 = pneg %p277
    $region38: #{relu_conv_bn.3} parent=5 // pred_check_branch
      %280 = sbr.rel (%p278) target = $region40
    $region39: #{relu_conv_bn.3} parent=5 // pred_region
      %s281 = ssub.s32 %s9, 2
      // Predicated region
      $region41: #{relu_conv_bn.3} parent=39 // pred_check
        %p282 = pneg %p106
      $region42: #{relu_conv_bn.3} parent=39 // pred_check_branch
        %284 = sbr.rel (%p282) target = $region44
      $region43: #{relu_conv_bn.3} parent=39 // pred_region
        %s285 = smul.u32 16, %s15
        %p286 = scmp.lt.s32.totalorder %s285, 63
        %s287 = scalar_select %p286, %s285, 63
        %s288 = smul.addr %s287, 8
        %s289 = scalar_lea.vmem %s3, %s288
      $region44: #{relu_conv_bn.3} parent=39 // pred_fallthru
        _
    $region40: #{relu_conv_bn.3} parent=5 // pred_fallthru
      _
  $region6: #{relu_conv_bn.3} parent=0 // loop_footer
    %s13 = sadd.s32 1, %s9
  $region7: #{relu_conv_bn.3} parent=0 // loop_footer_branch
    %8 = sbr.rel target = $region3
  $region8: #{relu_conv_bn.3} parent=0 // loop_exit
    _

// kernel: relu_conv_bn.2
$region0: #{relu_conv_bn.2}
  #allocation0 [shape = 'u32[]', space=smem, size = 0x4, offset = 0x4, fixed_abs, tag = 'smem constant byte address 0x4 - core index']
  #allocation1 [shape = 'u32[144,128]{1,0:T(1,128)}', space=vmem, size = 0x12000, scoped, tag = 'internal scratch']
  %s0 = inlined_call_operand.vmem [shape: bf16[512,4], index: 0, kind: input, shape index: {}]
  %s1 = inlined_call_operand.vmem [shape: bf16[4,128], index: 1, kind: input, shape index: {}]
  %s2 = inlined_call_operand.vmem [shape: bf16[512,128], index: 2, kind: output, shape index: {0}]
  %s3 = inlined_call_operand.vmem [shape: f32[32,128], index: 3, kind: output, shape index: {1}]
  %4 = xla_tuple %s2, %s3
  %s5 = sld [smem:[#allocation0]]
  $region49: #{relu_conv_bn.2} parent=0
    _
  %s7 = ssub.s32 1, %s5
  %s8 = scalar_select 0, %s7, %s5
  loop: start=0, step=1, limit=6
  $region2: #{relu_conv_bn.2} parent=0 // loop_pre_header
    _
  $region3: #{relu_conv_bn.2} parent=0 // loop_header
    %s10 = sphi 0, %s14
    %p11 = scmp.ge.s32.totalorder %s10, 6
    %s20 = sphi 0, %s22
    %s23 = sphi 0, %s20
    %s24 = sphi 0, %s23
    %s40 = sphi 0, %s24
    %s44 = sphi 0, %s44
    %s46 = sphi 0, %s44
    %s47 = sphi 0, %s46
    %s61 = sphi 0, %s47
    %s67 = sphi 0, %s69
    %s70 = sphi 0, %s67
    %s71 = sphi 0, %s70
    %s87 = sphi 0, %s71
    %s93 = sphi 0, %s95
    %s96 = sphi 0, %s93
    %s97 = sphi 0, %s96
    %s113 = sphi 0, %s97
  $region4: #{relu_conv_bn.2} parent=0 // loop_header_branch
    %13 = sbr.rel (%p11) target = $region8
  $region5: #{relu_conv_bn.2} parent=0 // loop_body
    %s15 = ssub.s32 %s10, 1
    %s16 = ssub.s32 %s10, 2
    %s17 = sadd.s32 %s10, 1
    %s18 = ssub.s32 %s10, %s17
    %p19 = scmp.eq.s32.totalorder %s18, 0
    %s21 = sadd.s32 %s20, 1
    %s22 = scalar_select %p19, %s20, %s21
    %p25 = pneg %p19
    %p26 = scmp.eq.s32.totalorder %s10, 3
    %p27 = por %p25, %p26
    %p28 = scmp.ne.s32.totalorder %s20, %s23
    %p29 = scmp.eq.s32.totalorder %s10, 0
    %p30 = por %p28, %p29
    %p31 = scmp.ne.s32.totalorder %s20, %s23
    %p32 = scmp.eq.s32.totalorder %s15, 3
    %p33 = por %p31, %p32
    %p34 = scmp.ne.s32.totalorder %s23, %s24
    %p35 = scmp.eq.s32.totalorder %s15, 0
    %p36 = por %p34, %p35
    %p37 = scmp.ne.s32.totalorder %s23, %s24
    %p38 = scmp.eq.s32.totalorder %s16, 3
    %p39 = por %p37, %p38
    %p41 = scmp.ne.s32.totalorder %s24, %s40
    %p42 = scmp.eq.s32.totalorder %s16, 0
    %p43 = por %p41, %p42
    %s45 = sadd.s32 %s44, 1
    %p48 = scmp.eq.s32.totalorder %s10, 3
    %p49 = scmp.ne.s32.totalorder %s44, %s46
    %p50 = scmp.eq.s32.totalorder %s10, 0
    %p51 = por %p49, %p50
    %p52 = scmp.ne.s32.totalorder %s44, %s46
    %p53 = scmp.eq.s32.totalorder %s15, 3
    %p54 = por %p52, %p53
    %p55 = scmp.ne.s32.totalorder %s46, %s47
    %p56 = scmp.eq.s32.totalorder %s15, 0
    %p57 = por %p55, %p56
    %p58 = scmp.ne.s32.totalorder %s46, %s47
    %p59 = scmp.eq.s32.totalorder %s16, 3
    %p60 = por %p58, %p59
    %p62 = scmp.ne.s32.totalorder %s47, %s61
    %p63 = scmp.eq.s32.totalorder %s16, 0
    %p64 = por %p62, %p63
    %s65 = ssub.s32 %s10, %s17
    %p66 = scmp.eq.s32.totalorder %s65, 0
    %s68 = sadd.s32 %s67, 1
    %s69 = scalar_select %p66, %s67, %s68
    %p72 = pneg %p66
    %p73 = scmp.eq.s32.totalorder %s10, 3
    %p74 = por %p72, %p73
    %p75 = scmp.ne.s32.totalorder %s67, %s70
    %p76 = scmp.eq.s32.totalorder %s10, 0
    %p77 = por %p75, %p76
    %p78 = scmp.ne.s32.totalorder %s67, %s70
    %p79 = scmp.eq.s32.totalorder %s15, 3
    %p80 = por %p78, %p79
    %p81 = scmp.ne.s32.totalorder %s70, %s71
    %p82 = scmp.eq.s32.totalorder %s15, 0
    %p83 = por %p81, %p82
    %p84 = scmp.ne.s32.totalorder %s70, %s71
    %p85 = scmp.eq.s32.totalorder %s16, 3
    %p86 = por %p84, %p85
    %p88 = scmp.ne.s32.totalorder %s71, %s87
    %p89 = scmp.eq.s32.totalorder %s16, 0
    %p90 = por %p88, %p89
    %s91 = ssub.s32 %s10, %s17
    %p92 = scmp.eq.s32.totalorder %s91, 0
    %s94 = sadd.s32 %s93, 1
    %s95 = scalar_select %p92, %s93, %s94
    %p98 = pneg %p92
    %p99 = scmp.eq.s32.totalorder %s10, 3
    %p100 = por %p98, %p99
    %p101 = scmp.ne.s32.totalorder %s93, %s96
    %p102 = scmp.eq.s32.totalorder %s10, 0
    %p103 = por %p101, %p102
    %p104 = scmp.ne.s32.totalorder %s93, %s96
    %p105 = scmp.eq.s32.totalorder %s15, 3
    %p106 = por %p104, %p105
    %p107 = scmp.ne.s32.totalorder %s96, %s97
    %p108 = scmp.eq.s32.totalorder %s15, 0
    %p109 = por %p107, %p108
    %p110 = scmp.ne.s32.totalorder %s96, %s97
    %p111 = scmp.eq.s32.totalorder %s16, 3
    %p112 = por %p110, %p111
    %p114 = scmp.ne.s32.totalorder %s97, %s113
    %p115 = scmp.eq.s32.totalorder %s16, 0
    %p116 = por %p114, %p115
    %p117 = scmp.le.s32.totalorder 1, %s10
    %p118 = scmp.lt.s32.totalorder %s10, 5
    %p119 = pnand %p117, %p118
    %p120 = pneg %p119
    // Predicated region
    $region9: #{relu_conv_bn.2} parent=5 // pred_check
      _
    $region10: #{relu_conv_bn.2} parent=5 // pred_check_branch
      %122 = sbr.rel (%p119) target = $region12
    $region11: #{relu_conv_bn.2} parent=5 // pred_region
      %s123 = ssub.s32 %s10, 1
      // Predicated region
      $region13: #{relu_conv_bn.2} parent=11 // pred_check
        %p124 = pneg %p57
      $region14: #{relu_conv_bn.2} parent=11 // pred_check_branch
        %126 = sbr.rel (%p124) target = $region16
      $region15: #{relu_conv_bn.2} parent=11 // pred_region
        _
      $region16: #{relu_conv_bn.2} parent=11 // pred_fallthru
        _
    $region12: #{relu_conv_bn.2} parent=5 // pred_fallthru
      _
    %p127 = scmp.lt.s32.totalorder %s10, 4
    // Predicated region
    $region17: #{relu_conv_bn.2} parent=5 // pred_check
      %p128 = pneg %p127
    $region18: #{relu_conv_bn.2} parent=5 // pred_check_branch
      %130 = sbr.rel (%p128) target = $region20
    $region19: #{relu_conv_bn.2} parent=5 // pred_region
      // Predicated region
      $region21: #{relu_conv_bn.2} parent=19 // pred_check
        %p131 = pneg %p30
      $region22: #{relu_conv_bn.2} parent=19 // pred_check_branch
        %133 = sbr.rel (%p131) target = $region24
      $region23: #{relu_conv_bn.2} parent=19 // pred_region
        %s134 = smul.u32 16, %s10
        %p135 = scmp.lt.s32.totalorder %s134, 63
        %s136 = scalar_select %p135, %s134, 63
        %s137 = smul.addr %s136, 4
        %s138 = scalar_lea.vmem %s0, %s137
        %s139 = smul.u32 16, %s10
      $region24: #{relu_conv_bn.2} parent=19 // pred_fallthru
        _
    $region20: #{relu_conv_bn.2} parent=5 // pred_fallthru
      _
    %p140 = scmp.le.s32.totalorder 1, %s10
    %p141 = scmp.lt.s32.totalorder %s10, 5
    %p142 = pnand %p140, %p141
    %p143 = pneg %p142
    // Predicated region
    $region25: #{relu_conv_bn.2} parent=5 // pred_check
      _
    $region26: #{relu_conv_bn.2} parent=5 // pred_check_branch
      %145 = sbr.rel (%p142) target = $region28
    $region27: #{relu_conv_bn.2} parent=5 // pred_region
      %s146 = ssub.s32 %s10, 1
      %s147 = smul.u32 16, %s15
      %p148 = scmp.lt.s32.totalorder %s147, 63
      %s149 = scalar_select %p148, %s147, 63
      %s150 = smul.addr %s149, 4
      %s151 = scalar_lea.vmem %s0, %s150
      %p152 = pneg %p36
      %p153 = pneg %p33
      %p154 = pneg %p57
      %p155 = pneg %p54
      %p156 = pneg %p83
      %p157 = pneg %p80
      %s158 = smul.u32 16, %s15
      %p159 = scmp.lt.s32.totalorder %s158, 63
      %s160 = scalar_select %p159, %s158, 63
      %s161 = smul.addr %s160, 4
      %s162 = scalar_lea.vmem %s2, %s161
      %p163 = pneg %p109
      %p164 = pneg %p106
      %p165 = scmp.lt.s32.totalorder %s15, 3
      %s166 = scalar_select %p165, %s15, 3
      %s167 = smul.addr %s166, 8
      %s168 = scalar_lea.vmem %s3, %s167
      %s169 = smul.u32 16, %s15
      %p170 = scmp.lt.s32.totalorder %s169, 63
      %s171 = scalar_select %p170, %s169, 63
      %s172 = smul.addr %s171, 4
      %s173 = scalar_lea.vmem %s0, %s172
      %s174 = smul.u32 16, %s15
      %s175 = smul.u32 16, %s15
      %p176 = scmp.lt.s32.totalorder %s175, 63
      %s177 = scalar_select %p176, %s175, 63
      %s178 = smul.addr %s177, 4
      %s179 = scalar_lea.vmem %s2, %s178
      %s180 = smul.u32 16, %s15
      %p181 = scmp.lt.s32.totalorder %s15, 3
      %s182 = scalar_select %p181, %s15, 3
      %s183 = smul.addr %s182, 8
      %s184 = scalar_lea.vmem %s3, %s183
      %v186 = vld [vmem:[%s173] sm:$0xf]
      %v187 = vld [vmem:[%s173 + $0x4] sm:$0xf]
      %v188 = vld [vmem:[%s173 + $0x8] sm:$0xf]
      %v189 = vld [vmem:[%s173 + $0xc] sm:$0xf]
      %v190 = vld [vmem:[%s173 + $0x10] sm:$0xf]
      %v191 = vld [vmem:[%s173 + $0x14] sm:$0xf]
      %v192 = vld [vmem:[%s173 + $0x18] sm:$0xf]
      %v193 = vld [vmem:[%s173 + $0x1c] sm:$0xf]
      %v194 = vld [vmem:[%s173 + $0x20] sm:$0xf]
      %v195 = vld [vmem:[%s173 + $0x24] sm:$0xf]
      %v196 = vld [vmem:[%s173 + $0x28] sm:$0xf]
      %v197 = vld [vmem:[%s173 + $0x2c] sm:$0xf]
      %v198 = vld [vmem:[%s173 + $0x30] sm:$0xf]
      %v199 = vld [vmem:[%s173 + $0x34] sm:$0xf]
      %v200 = vld [vmem:[%s173 + $0x38] sm:$0xf]
      %v201 = vld [vmem:[%s173 + $0x3c] sm:$0xf]
      %v202 = vld [vmem:[%s1] sm:$0x3]
      %v219 = vunpack.c.l.b16 %v186
      %v220 = vunpack.c.l.b16 %v187
      %v221 = vunpack.c.l.b16 %v188
      %v222 = vunpack.c.l.b16 %v189
      %v223 = vunpack.c.l.b16 %v190
      %v224 = vunpack.c.l.b16 %v191
      %v225 = vunpack.c.l.b16 %v192
      %v226 = vunpack.c.l.b16 %v193
      %v227 = vunpack.c.l.b16 %v194
      %v228 = vunpack.c.l.b16 %v195
      %v229 = vunpack.c.l.b16 %v196
      %v230 = vunpack.c.l.b16 %v197
      %v231 = vunpack.c.l.b16 %v198
      %v232 = vunpack.c.l.b16 %v199
      %v233 = vunpack.c.l.b16 %v200
      %v234 = vunpack.c.l.b16 %v201
      %v235 = vpack.c.b16 %v220, %v219
      %v236 = vpack.c.b16 %v222, %v221
      %v237 = vpack.c.b16 %v224, %v223
      %v238 = vpack.c.b16 %v226, %v225
      %v239 = vpack.c.b16 %v228, %v227
      %v240 = vpack.c.b16 %v230, %v229
      %v241 = vpack.c.b16 %v232, %v231
      %v242 = vpack.c.b16 %v234, %v233
      %vm243 = vcmask 31744
      %v245 = vsel %vm243, %v235, 0
      %v248 = vsel %vm243, %v236, 0
      %v251 = vsel %vm243, %v237, 0
      %v254 = vsel %vm243, %v238, 0
      %v257 = vsel %vm243, %v239, 0
      %v260 = vsel %vm243, %v240, 0
      %v263 = vsel %vm243, %v241, 0
      %v266 = vsel %vm243, %v242, 0
      %vm268 = vcmask 1041408
      %v270 = vsel %vm268, %v202, 0
      %272 = vmatprep.subr.bf16.mxu0 0
      %273 = vmatpush1.bf16.msra.mxu0 %v270
      %274 = vmatprep.subr.bf16.mxu0 0
      %275 = vmatpush1.bf16.msra.mxu0 0
      %276 = vmatprep.subr.bf16.mxu0 0
      %277 = vmatpush1.bf16.msra.mxu0 0
      %278 = vmatprep.subr.bf16.mxu0 0
      %279 = vmatpush1.bf16.msra.mxu0 0
      %280 = vmatprep.subr.bf16.mxu0 0
      %281 = vmatpush1.bf16.msra.mxu0 0
      %282 = vmatprep.subr.bf16.mxu0 0
      %283 = vmatpush1.bf16.msra.mxu0 0
      %284 = vmatprep.subr.bf16.mxu0 0
      %285 = vmatpush1.bf16.msra.mxu0 0
      %286 = vmatprep.subr.bf16.mxu0 0
      %287 = vmatpush1.bf16.msra.mxu0 0
      %288 = vmatprep.subr.bf16.mxu0 0
      %289 = vmatpush1.bf16.msra.mxu0 0
      %290 = vmatprep.subr.bf16.mxu0 0
      %291 = vmatpush1.bf16.msra.mxu0 0
      %292 = vmatprep.subr.bf16.mxu0 0
      %293 = vmatpush1.bf16.msra.mxu0 0
      %294 = vmatprep.subr.bf16.mxu0 0
      %295 = vmatpush1.bf16.msra.mxu0 0
      %296 = vmatprep.subr.bf16.mxu0 0
      %297 = vmatpush1.bf16.msra.mxu0 0
      %298 = vmatprep.subr.bf16.mxu0 0
      %299 = vmatpush1.bf16.msra.mxu0 0
      %300 = vmatprep.subr.bf16.mxu0 0
      %301 = vmatpush1.bf16.msra.mxu0 0
      %302 = vmatprep.subr.bf16.mxu0 0
      %303 = vmatpush1.bf16.msra.mxu0 0
      %304 = vmatprep.mubr.bf16.mxu0 0
      %305 = vmatmul.mubr.bf16.gmra.mrb[0].mxu0 %v245
      %v306 = vpop.f32.mrb[0].mxu0
      %v307 = vadd.f32 0.0, %v306
      %v308 = vpop.f32.mrb[0].mxu0
      %v309 = vpop.f32.mrb[0].mxu0
      %v310 = vadd.f32 0.0, %v309
      %v311 = vpop.f32.mrb[0].mxu0
      %312 = vmatprep.mubr.bf16.mxu0 0
      %313 = vmatmul.mubr.bf16.gmra.mrb[0].mxu0 %v248
      %v314 = vpop.f32.mrb[0].mxu0
      %v315 = vadd.f32 0.0, %v314
      %v316 = vpop.f32.mrb[0].mxu0
      %v317 = vpop.f32.mrb[0].mxu0
      %v318 = vadd.f32 0.0, %v317
      %v319 = vpop.f32.mrb[0].mxu0
      %320 = vmatprep.mubr.bf16.mxu0 0
      %321 = vmatmul.mubr.bf16.gmra.mrb[0].mxu0 %v251
      %v322 = vpop.f32.mrb[0].mxu0
      %v323 = vadd.f32 0.0, %v322
      %v324 = vpop.f32.mrb[0].mxu0
      %v325 = vpop.f32.mrb[0].mxu0
      %v326 = vadd.f32 0.0, %v325
      %v327 = vpop.f32.mrb[0].mxu0
      %328 = vmatprep.mubr.bf16.mxu0 0
      %329 = vmatmul.mubr.bf16.gmra.mrb[0].mxu0 %v254
      %v330 = vpop.f32.mrb[0].mxu0
      %v331 = vadd.f32 0.0, %v330
      %v332 = vpop.f32.mrb[0].mxu0
      %v333 = vpop.f32.mrb[0].mxu0
      %v334 = vadd.f32 0.0, %v333
      %v335 = vpop.f32.mrb[0].mxu0
      %336 = vmatprep.mubr.bf16.mxu0 0
      %337 = vmatmul.mubr.bf16.gmra.mrb[0].mxu0 %v257
      %v338 = vpop.f32.mrb[0].mxu0
      %v339 = vadd.f32 0.0, %v338
      %v340 = vpop.f32.mrb[0].mxu0
      %v341 = vpop.f32.mrb[0].mxu0
      %v342 = vadd.f32 0.0, %v341
      %v343 = vpop.f32.mrb[0].mxu0
      %344 = vmatprep.mubr.bf16.mxu0 0
      %345 = vmatmul.mubr.bf16.gmra.mrb[0].mxu0 %v260
      %v346 = vpop.f32.mrb[0].mxu0
      %v347 = vadd.f32 0.0, %v346
      %v348 = vpop.f32.mrb[0].mxu0
      %v349 = vpop.f32.mrb[0].mxu0
      %v350 = vadd.f32 0.0, %v349
      %v351 = vpop.f32.mrb[0].mxu0
      %352 = vmatprep.mubr.bf16.mxu0 0
      %353 = vmatmul.mubr.bf16.gmra.mrb[0].mxu0 %v263
      %v354 = vpop.f32.mrb[0].mxu0
      %v355 = vadd.f32 0.0, %v354
      %v356 = vpop.f32.mrb[0].mxu0
      %v357 = vpop.f32.mrb[0].mxu0
      %v358 = vadd.f32 0.0, %v357
      %v359 = vpop.f32.mrb[0].mxu0
      %360 = vmatprep.mubr.bf16.mxu0 0
      %361 = vmatmul.mubr.bf16.gmra.mrb[0].mxu0 %v266
      %v362 = vpop.f32.mrb[0].mxu0
      %v363 = vadd.f32 0.0, %v362
      %v364 = vpop.f32.mrb[0].mxu0
      %v365 = vpop.f32.mrb[0].mxu0
      %v366 = vadd.f32 0.0, %v365
      %v367 = vpop.f32.mrb[0].mxu0
      %368 = vdwg.mxu0
      %v369 = vpack.c.bf16 %v310, %v307
      %v370 = vpack.c.bf16 %v318, %v315
      %v371 = vpack.c.bf16 %v326, %v323
      %v372 = vpack.c.bf16 %v334, %v331
      %v373 = vpack.c.bf16 %v342, %v339
      %v374 = vpack.c.bf16 %v350, %v347
      %v375 = vpack.c.bf16 %v358, %v355
      %v376 = vpack.c.bf16 %v366, %v363
      %v385 = vunpack.c.l.b16 %v369
      %v386 = vunpack.c.h.b16 %v369
      %v387 = vunpack.c.l.b16 %v370
      %v388 = vunpack.c.h.b16 %v370
      %v389 = vunpack.c.l.b16 %v371
      %v390 = vunpack.c.h.b16 %v371
      %v391 = vunpack.c.l.b16 %v372
      %v392 = vunpack.c.h.b16 %v372
      %v393 = vunpack.c.l.b16 %v373
      %v394 = vunpack.c.h.b16 %v373
      %v395 = vunpack.c.l.b16 %v374
      %v396 = vunpack.c.h.b16 %v374
      %v397 = vunpack.c.l.b16 %v375
      %v398 = vunpack.c.h.b16 %v375
      %v399 = vunpack.c.l.b16 %v376
      %v400 = vunpack.c.h.b16 %v376
      %v401 = vpack.c.b16 %v385, %v385
      %v402 = vpack.c.b16 %v386, %v386
      %v403 = vpack.c.b16 %v387, %v387
      %v404 = vpack.c.b16 %v388, %v388
      %v405 = vpack.c.b16 %v389, %v389
      %v406 = vpack.c.b16 %v390, %v390
      %v407 = vpack.c.b16 %v391, %v391
      %v408 = vpack.c.b16 %v392, %v392
      %v409 = vpack.c.b16 %v393, %v393
      %v410 = vpack.c.b16 %v394, %v394
      %v411 = vpack.c.b16 %v395, %v395
      %v412 = vpack.c.b16 %v396, %v396
      %v413 = vpack.c.b16 %v397, %v397
      %v414 = vpack.c.b16 %v398, %v398
      %v415 = vpack.c.b16 %v399, %v399
      %v416 = vpack.c.b16 %v400, %v400
      %433 = vst [vmem:[%s179] sm:$0xf] %v401
      %434 = vst [vmem:[%s179 + $0x4] sm:$0xf] %v402
      %435 = vst [vmem:[%s179 + $0x8] sm:$0xf] %v403
      %436 = vst [vmem:[%s179 + $0xc] sm:$0xf] %v404
      %437 = vst [vmem:[%s179 + $0x10] sm:$0xf] %v405
      %438 = vst [vmem:[%s179 + $0x14] sm:$0xf] %v406
      %439 = vst [vmem:[%s179 + $0x18] sm:$0xf] %v407
      %440 = vst [vmem:[%s179 + $0x1c] sm:$0xf] %v408
      %441 = vst [vmem:[%s179 + $0x20] sm:$0xf] %v409
      %442 = vst [vmem:[%s179 + $0x24] sm:$0xf] %v410
      %443 = vst [vmem:[%s179 + $0x28] sm:$0xf] %v411
      %444 = vst [vmem:[%s179 + $0x2c] sm:$0xf] %v412
      %445 = vst [vmem:[%s179 + $0x30] sm:$0xf] %v413
      %446 = vst [vmem:[%s179 + $0x34] sm:$0xf] %v414
      %447 = vst [vmem:[%s179 + $0x38] sm:$0xf] %v415
      %448 = vst [vmem:[%s179 + $0x3c] sm:$0xf] %v416
      %v449 = vadd.f32 %v307, %v310
      %v450 = vadd.f32 %v449, %v315
      %v451 = vadd.f32 %v450, %v318
      %v452 = vadd.f32 %v451, %v323
      %v453 = vadd.f32 %v452, %v326
      %v454 = vadd.f32 %v453, %v331
      %v455 = vadd.f32 %v454, %v334
      %v456 = vadd.f32 %v455, %v339
      %v457 = vadd.f32 %v456, %v342
      %v458 = vadd.f32 %v457, %v347
      %v459 = vadd.f32 %v458, %v350
      %v460 = vadd.f32 %v459, %v355
      %v461 = vadd.f32 %v460, %v358
      %v462 = vadd.f32 %v461, %v363
      %v463 = vadd.f32 %v462, %v366
      %v464 = vrot.slane %v463, 4
      %v465 = vadd.f32 %v463, %v464
      %v466 = vrot.slane %v465, 2
      %v467 = vadd.f32 %v465, %v466
      %v468 = vrot.slane %v467, 1
      %v469 = vadd.f32 %v467, %v468
      %v470 = vmul.f32 %v307, %v307
      %v471 = vmul.f32 %v310, %v310
      %v472 = vmul.f32 %v315, %v315
      %v473 = vmul.f32 %v318, %v318
      %v474 = vmul.f32 %v323, %v323
      %v475 = vmul.f32 %v326, %v326
      %v476 = vmul.f32 %v331, %v331
      %v477 = vmul.f32 %v334, %v334
      %v478 = vmul.f32 %v339, %v339
      %v479 = vmul.f32 %v342, %v342
      %v480 = vmul.f32 %v347, %v347
      %v481 = vmul.f32 %v350, %v350
      %v482 = vmul.f32 %v355, %v355
      %v483 = vmul.f32 %v358, %v358
      %v484 = vmul.f32 %v363, %v363
      %v485 = vmul.f32 %v366, %v366
      %v486 = vadd.f32 %v470, %v471
      %v487 = vadd.f32 %v486, %v472
      %v488 = vadd.f32 %v487, %v473
      %v489 = vadd.f32 %v488, %v474
      %v490 = vadd.f32 %v489, %v475
      %v491 = vadd.f32 %v490, %v476
      %v492 = vadd.f32 %v491, %v477
      %v493 = vadd.f32 %v492, %v478
      %v494 = vadd.f32 %v493, %v479
      %v495 = vadd.f32 %v494, %v480
      %v496 = vadd.f32 %v495, %v481
      %v497 = vadd.f32 %v496, %v482
      %v498 = vadd.f32 %v497, %v483
      %v499 = vadd.f32 %v498, %v484
      %v500 = vadd.f32 %v499, %v485
      %v501 = vrot.slane %v500, 4
      %v502 = vadd.f32 %v500, %v501
      %v503 = vrot.slane %v502, 2
      %v504 = vadd.f32 %v502, %v503
      %v505 = vrot.slane %v504, 1
      %v506 = vadd.f32 %v504, %v505
      %vm507 = vcmask 1040384
      %v508 = vsel %vm507, %v469, %v506
      %v509 = vsel %vm268, %v508, 0.0
      %510 = vst [vmem:[%s184] sm:$0xff] %v509
      %s511 = smul.u32 16, %s15
      %p512 = scmp.lt.s32.totalorder %s511, 63
      %s513 = scalar_select %p512, %s511, 63
      %s514 = smul.addr %s513, 4
      %s515 = scalar_lea.vmem %s2, %s514
      %p516 = scmp.lt.s32.totalorder %s15, 3
      %s517 = scalar_select %p516, %s15, 3
      %s518 = smul.addr %s517, 8
      %s519 = scalar_lea.vmem %s3, %s518
      // Predicated region
      $region29: #{relu_conv_bn.2} parent=27 // pred_check
        %p520 = pneg %p80
      $region30: #{relu_conv_bn.2} parent=27 // pred_check_branch
        %522 = sbr.rel (%p520) target = $region32
      $region31: #{relu_conv_bn.2} parent=27 // pred_region
        %s523 = smul.u32 16, %s15
      $region32: #{relu_conv_bn.2} parent=27 // pred_fallthru
        _
      // Predicated region
      $region33: #{relu_conv_bn.2} parent=27 // pred_check
        %p524 = pneg %p106
      $region34: #{relu_conv_bn.2} parent=27 // pred_check_branch
        %526 = sbr.rel (%p524) target = $region36
      $region35: #{relu_conv_bn.2} parent=27 // pred_region
        _
      $region36: #{relu_conv_bn.2} parent=27 // pred_fallthru
        _
    $region28: #{relu_conv_bn.2} parent=5 // pred_fallthru
      _
    %p527 = scmp.le.s32.totalorder 2, %s10
    // Predicated region
    $region37: #{relu_conv_bn.2} parent=5 // pred_check
      %p528 = pneg %p527
    $region38: #{relu_conv_bn.2} parent=5 // pred_check_branch
      %530 = sbr.rel (%p528) target = $region40
    $region39: #{relu_conv_bn.2} parent=5 // pred_region
      %s531 = ssub.s32 %s10, 2
      // Predicated region
      $region41: #{relu_conv_bn.2} parent=39 // pred_check
        %p532 = pneg %p86
      $region42: #{relu_conv_bn.2} parent=39 // pred_check_branch
        %534 = sbr.rel (%p532) target = $region44
      $region43: #{relu_conv_bn.2} parent=39 // pred_region
        %s535 = smul.u32 16, %s16
        %p536 = scmp.lt.s32.totalorder %s535, 63
        %s537 = scalar_select %p536, %s535, 63
        %s538 = smul.addr %s537, 4
        %s539 = scalar_lea.vmem %s2, %s538
      $region44: #{relu_conv_bn.2} parent=39 // pred_fallthru
        _
      // Predicated region
      $region45: #{relu_conv_bn.2} parent=39 // pred_check
        %p540 = pneg %p112
      $region46: #{relu_conv_bn.2} parent=39 // pred_check_branch
        %542 = sbr.rel (%p540) target = $region48
      $region47: #{relu_conv_bn.2} parent=39 // pred_region
        %p543 = scmp.lt.s32.totalorder %s16, 3
        %s544 = scalar_select %p543, %s16, 3
        %s545 = smul.addr %s544, 8
        %s546 = scalar_lea.vmem %s3, %s545
      $region48: #{relu_conv_bn.2} parent=39 // pred_fallthru
        _
    $region40: #{relu_conv_bn.2} parent=5 // pred_fallthru
      _
  $region6: #{relu_conv_bn.2} parent=0 // loop_footer
    %s14 = sadd.s32 1, %s10
  $region7: #{relu_conv_bn.2} parent=0 // loop_footer_branch
    %9 = sbr.rel target = $region3
  $region8: #{relu_conv_bn.2} parent=0 // loop_exit
    _

</llo_original>
